<compile_context>
chip_gen: v7x
topology: tpu7x:2x2x1
jax: 0.10.0
libtpu: 0.0.40
codegen_flags: <defaults>
</compile_context>

<pallas_src>
import functools

import jax
import jax.numpy as jnp
from jax.experimental import pallas as pl
from jax.experimental.pallas import tpu as pltpu


def _round_up(n: int, m: int) -> int:
    return ((n + m - 1) // m) * m


def _prompter_kernel(x_ref, patch_ref, o_ref):
    # Single fused, full-width add; the (zero-padded) patch broadcasts over
    # the batch-tile dimension.  No second masked store to the corner.
    o_ref[...] = x_ref[...] + patch_ref[...]


def _fixed_patch_prompter_impl(x: jax.Array, patch: jax.Array) -> jax.Array:
    """out = x with x[:, :, :P, :P] += patch (in-place; x is donated)."""
    B, C, H, W = x.shape
    assert patch.ndim == 4 and patch.shape[0] == 1 and patch.shape[1] == C
    P = patch.shape[2]
    assert patch.shape[3] == P and P <= H and P <= W

    # Rows actually touched, rounded up to the sublane granule (8) so the
    # block satisfies the (8, 128) rule; the extra rows just get +0.
    Pr = min(H, _round_up(P, 8))

    # Zero-pad the patch to the block's spatial footprint once on the wrapper
    # side (hoisted, tiny) so the kernel is a single unmasked add.
    patch_p = jnp.zeros((C, Pr, W), dtype=x.dtype)
    patch_p = patch_p.at[:, :P, :P].set(patch[0].astype(x.dtype))

    # Batch tile: largest divisor of B with <= ~4 MiB per block, so
    # 2 x (in + out) double-buffered blocks stay well under every
    # generation's VMEM (incl. v7x's 64 MiB physical).
    itemsize = jnp.dtype(x.dtype).itemsize
    per_image_bytes = C * Pr * W * itemsize
    bt = max(1, min(B, (4 << 20) // max(per_image_bytes, 1)))
    while B % bt:
        bt -= 1
    grid = (B // bt,)

    lane_dense = (Pr * W) % 128 == 0
    if lane_dense:
        # Fold (H, W) -> H*W so the last (lane) dim of every store is a
        # multiple of 128: full-width unmasked vst instead of masked stores.
        xv = x.reshape(B, C, H * W)
        pv = patch_p.reshape(C, Pr * W)
        x_spec = pl.BlockSpec((bt, C, Pr * W), lambda i: (i, 0, 0))
        p_spec = pl.BlockSpec((C, Pr * W), lambda i: (0, 0))   # resident patch
        out_shape = jax.ShapeDtypeStruct((B, C, H * W), x.dtype)
    else:
        # Fallback: keep NCHW, still restricted to the first Pr rows / full W.
        xv = x
        pv = patch_p
        x_spec = pl.BlockSpec((bt, C, Pr, W), lambda i: (i, 0, 0, 0))
        p_spec = pl.BlockSpec((C, Pr, W), lambda i: (0, 0, 0))  # resident patch
        out_shape = jax.ShapeDtypeStruct((B, C, H, W), x.dtype)

    out = pl.pallas_call(
        _prompter_kernel,
        out_shape=out_shape,
        grid=grid,
        in_specs=[x_spec, p_spec],
        out_specs=x_spec,
        # In-place update: the output HBM buffer IS x, so everything outside
        # the first Pr rows is never touched (matches PyTorch's in-place +=).
        input_output_aliases={0: 0},
        compiler_params=pltpu.CompilerParams(
            # 1-D batch grid, parallel -> sharded across v7x's 2 TensorCores;
            # measured no-op on single-TC v5e/v6e.
            dimension_semantics=("parallel",),
            # Above the 16/32 MiB scoped defaults, below v7x's 64 MiB physical.
            vmem_limit_bytes=48 * 1024 * 1024,
        ),
    )(xv, pv)

    return out.reshape(B, C, H, W)


# x is donated: callers must not reuse the original x afterwards (same
# contract as the PyTorch module, which mutates x in place).
fixed_patch_prompter = jax.jit(_fixed_patch_prompter_impl, donate_argnums=(0,))


if __name__ == "__main__":
    # Module config (args.image_size, args.prompt_size) -- small shapes.
    image_size = 16
    prompt_size = 8
    batch = 2
    channels = 3  # fixed to 3 by the module (RGB patch)

    key = jax.random.PRNGKey(0)
    kx, kp = jax.random.split(key)

    x = jax.random.normal(kx, (batch, channels, image_size, image_size),
                          dtype=jnp.float32)
    patch = jax.random.normal(kp, (1, channels, prompt_size, prompt_size),
                              dtype=jnp.float32)

    # Reference computed BEFORE the kernel call, since x is donated (in-place).
    ref = x.at[:, :, :prompt_size, :prompt_size].add(patch)
    x_shape, x_dtype = x.shape, x.dtype

    out = fixed_patch_prompter(x, patch)
    out = jax.block_until_ready(out)

    assert out.shape == x_shape and out.dtype == x_dtype
    assert jnp.allclose(out, ref, atol=1e-6), "mismatch vs reference"

    print("KERNEL_OK")
</pallas_src>

<mosaic_0001>
module attributes {stable_mosaic.version = 11 : i64} {
  func.func @_prompter_kernel(%arg0: i32, %arg1: memref<2x3x128xf32, #tpu.memory_space<vmem>>, %arg2: memref<3x128xf32, #tpu.memory_space<vmem>>, %arg3: memref<2x3x128xf32, #tpu.memory_space<vmem>>) attributes {dimension_semantics = [#tpu.dimension_semantics<parallel>], iteration_bounds = array<i64: 1>, scalar_prefetch = 0 : i64, scratch_operands = 0 : i64, tpu.core_type = #tpu.core_type<tc>, window_params = [{transform_indices = @transform_0, window_bounds = array<i64: 2, 3, 128>}, {pipeline_mode = #tpu.pipeline_mode<synchronous>, transform_indices = @transform_1, window_bounds = array<i64: 3, 128>}, {transform_indices = @transform_2, window_bounds = array<i64: 2, 3, 128>}]} {
    %c0 = arith.constant 0 : index
    %c0_0 = arith.constant 0 : index
    %c0_1 = arith.constant 0 : index
    %0 = vector.load %arg1[%c0, %c0_0, %c0_1] : memref<2x3x128xf32, #tpu.memory_space<vmem>>, vector<2x3x128xf32>
    %c0_2 = arith.constant 0 : index
    %c0_3 = arith.constant 0 : index
    %1 = vector.load %arg2[%c0_2, %c0_3] : memref<3x128xf32, #tpu.memory_space<vmem>>, vector<3x128xf32>
    %2 = vector.shape_cast %1 : vector<3x128xf32> to vector<1x3x128xf32>
    %3 = vector.broadcast %2 : vector<1x3x128xf32> to vector<2x3x128xf32>
    %4 = arith.addf %0, %3 : vector<2x3x128xf32>
    %c0_4 = arith.constant 0 : index
    %c0_5 = arith.constant 0 : index
    %c0_6 = arith.constant 0 : index
    %5 = vector.load %arg3[%c0_4, %c0_5, %c0_6] : memref<2x3x128xf32, #tpu.memory_space<vmem>>, vector<2x3x128xf32>
    tpu.vector_store %arg3[%c0_4, %c0_5, %c0_6], %4 {strides = array<i32>} : memref<2x3x128xf32, #tpu.memory_space<vmem>>, vector<2x3x128xf32>,
    return
  }
  func.func @transform_0(%arg0: i32) -> (i32, i32, i32) {
    %c0_i32 = arith.constant 0 : i32
    %c0_i32_0 = arith.constant 0 : i32
    %c0_i32_1 = arith.constant 0 : i32
    return %arg0, %c0_i32, %c0_i32_0 : i32, i32, i32
  }
  func.func @transform_1(%arg0: i32) -> (i32, i32) {
    %c0_i32 = arith.constant 0 : i32
    %c0_i32_0 = arith.constant 0 : i32
    %c0_i32_1 = arith.constant 0 : i32
    return %c0_i32, %c0_i32_0 : i32, i32
  }
  func.func @transform_2(%arg0: i32) -> (i32, i32, i32) {
    %c0_i32 = arith.constant 0 : i32
    %c0_i32_0 = arith.constant 0 : i32
    %c0_i32_1 = arith.constant 0 : i32
    return %arg0, %c0_i32, %c0_i32_0 : i32, i32, i32
  }
}

</mosaic_0001>

<llo_original>
// kernel: _fixed_patch_prompter_impl.1
$region0: #{_fixed_patch_prompter_impl.1}
  #allocation0 [shape = 'u32[]', space=smem, size = 0x4, offset = 0x4, fixed_abs, tag = 'smem constant byte address 0x4 - core index']
  #allocation1 [shape = 'u32[144,128]{1,0:T(1,128)}', space=vmem, size = 0x12000, scoped, tag = 'internal scratch']
  %s0 = inlined_call_operand.vmem [shape: f32[2,3,256], index: 0, kind: input, shape index: {}, may-alias: {0,2}]
  %s1 = inlined_call_operand.vmem [shape: f32[3,128], index: 1, kind: input, shape index: {}]
  %s2 = inlined_call_operand.vmem [shape: f32[2,3,256], index: 2, kind: output, shape index: {}, may-alias: {0,2}]
  %s3 = sld [smem:[#allocation0]]
  $region96: #{_fixed_patch_prompter_impl.1} parent=0
    _
  %s5 = ssub.s32 1, %s3
  %s6 = scalar_select 0, %s5, %s3
  $region1: #{_fixed_patch_prompter_impl.1} parent=0
    #allocation2 [shape = 'u8[4096]{0}', space=vmem, size = 0x1000, scoped, tag = 'input window, operand 0, single buffered']
    #allocation3 [shape = 'u8[4096]{0}', space=vmem, size = 0x1000, scoped, tag = 'output window, operand 0, single buffered']
    // Predicated region
    $region2: #{_fixed_patch_prompter_impl.1} parent=1 // pred_check
      _
    $region3: #{_fixed_patch_prompter_impl.1} parent=1 // pred_check_branch
      %8 = sbr.rel (0) target = $region5
    $region4: #{_fixed_patch_prompter_impl.1} parent=1 // pred_region
      // Predicated region
      $region6: #{_fixed_patch_prompter_impl.1} parent=4 // pred_check
        _
      $region7: #{_fixed_patch_prompter_impl.1} parent=4 // pred_check_branch
        %10 = sbr.rel (0) target = $region9
      $region8: #{_fixed_patch_prompter_impl.1} parent=4 // pred_region
        // Predicated region
        $region10: #{_fixed_patch_prompter_impl.1} parent=8 // pred_check
          _
        $region11: #{_fixed_patch_prompter_impl.1} parent=8 // pred_check_branch
          %12 = sbr.rel target = $region13
        $region12: #{_fixed_patch_prompter_impl.1} parent=8 // pred_region
          // Predicated region
          $region25: #{_fixed_patch_prompter_impl.1} parent=12 // pred_check
            _
          $region26: #{_fixed_patch_prompter_impl.1} parent=12 // pred_check_branch
            %29 = sbr.rel (0) target = $region28
          $region27: #{_fixed_patch_prompter_impl.1} parent=12 // pred_region
            loop: start=0, step=1, limit=1
            $region29: #{_fixed_patch_prompter_impl.1} parent=27 // loop_pre_header
              _
            $region30: #{_fixed_patch_prompter_impl.1} parent=27 // loop_header
              %s31 = sphi 0, %s35
              %p32 = scmp.ge.s32.totalorder %s31, 1
              %s36 = sphi %s0, %s0
              %s37 = sphi [#allocation2], [#allocation2]
            $region31: #{_fixed_patch_prompter_impl.1} parent=27 // loop_header_branch
              %34 = sbr.rel (%p32) target = $region35
            $region32: #{_fixed_patch_prompter_impl.1} parent=27 // loop_body
              _
            $region33: #{_fixed_patch_prompter_impl.1} parent=27 // loop_footer
              %s35 = sadd.s32 1, %s31
            $region34: #{_fixed_patch_prompter_impl.1} parent=27 // loop_footer_branch
              %30 = sbr.rel target = $region30
            $region35: #{_fixed_patch_prompter_impl.1} parent=27 // loop_exit
              _
            loop: start=0, step=1, limit=1
            $region36: #{_fixed_patch_prompter_impl.1} parent=27 // loop_pre_header
              _
            $region37: #{_fixed_patch_prompter_impl.1} parent=27 // loop_header
              %s40 = sphi 0, %s44
              %p41 = scmp.ge.s32.totalorder %s40, 1
              %s45 = sphi %s0, %s0
              %s46 = sphi [#allocation2], [#allocation2]
            $region38: #{_fixed_patch_prompter_impl.1} parent=27 // loop_header_branch
              %43 = sbr.rel (%p41) target = $region42
            $region39: #{_fixed_patch_prompter_impl.1} parent=27 // loop_body
              %v47 = vld [vmem:[%s45] sm:$0xf]
              %48 = vst [vmem:[%s46] sm:$0xf] %v47
              %v49 = vld [vmem:[%s45 + $0x8] sm:$0xf]
              %50 = vst [vmem:[%s46 + $0x4] sm:$0xf] %v49
            $region40: #{_fixed_patch_prompter_impl.1} parent=27 // loop_footer
              %s44 = sadd.s32 1, %s40
            $region41: #{_fixed_patch_prompter_impl.1} parent=27 // loop_footer_branch
              %39 = sbr.rel target = $region37
            $region42: #{_fixed_patch_prompter_impl.1} parent=27 // loop_exit
              _
          $region28: #{_fixed_patch_prompter_impl.1} parent=12 // pred_fallthru
            _
        $region13: #{_fixed_patch_prompter_impl.1} parent=8 // pred_fallthru
          _
        // Predicated region
        $region14: #{_fixed_patch_prompter_impl.1} parent=8 // pred_check
          _
        $region15: #{_fixed_patch_prompter_impl.1} parent=8 // pred_check_branch
          %14 = sbr.rel (0) target = $region17
        $region16: #{_fixed_patch_prompter_impl.1} parent=8 // pred_region
          loop: start=0, step=1, limit=1
          $region18: #{_fixed_patch_prompter_impl.1} parent=16 // loop_pre_header
            _
          $region19: #{_fixed_patch_prompter_impl.1} parent=16 // loop_header
            %s17 = sphi 0, %s21
            %p18 = scmp.ge.s32.totalorder %s17, 1
            %s22 = sphi %s0, %s0
            %s23 = sphi [#allocation2], [#allocation2]
          $region20: #{_fixed_patch_prompter_impl.1} parent=16 // loop_header_branch
            %20 = sbr.rel (%p18) target = $region24
          $region21: #{_fixed_patch_prompter_impl.1} parent=16 // loop_body
            %v24 = vld [vmem:[%s22] sm:$0xf]
            %25 = vst [vmem:[%s23] sm:$0xf] %v24
            %v26 = vld [vmem:[%s22 + $0x8] sm:$0xf]
            %27 = vst [vmem:[%s23 + $0x4] sm:$0xf] %v26
          $region22: #{_fixed_patch_prompter_impl.1} parent=16 // loop_footer
            %s21 = sadd.s32 1, %s17
          $region23: #{_fixed_patch_prompter_impl.1} parent=16 // loop_footer_branch
            %16 = sbr.rel target = $region19
          $region24: #{_fixed_patch_prompter_impl.1} parent=16 // loop_exit
            _
        $region17: #{_fixed_patch_prompter_impl.1} parent=8 // pred_fallthru
          _
      $region9: #{_fixed_patch_prompter_impl.1} parent=4 // pred_fallthru
        _
      %51 = vnop
    $region5: #{_fixed_patch_prompter_impl.1} parent=1 // pred_fallthru
      _
    // Predicated region
    $region43: #{_fixed_patch_prompter_impl.1} parent=1 // pred_check
      _
    $region44: #{_fixed_patch_prompter_impl.1} parent=1 // pred_check_branch
      %53 = sbr.rel (0) target = $region46
    $region45: #{_fixed_patch_prompter_impl.1} parent=1 // pred_region
      _
    $region46: #{_fixed_patch_prompter_impl.1} parent=1 // pred_fallthru
      _
    // Predicated region
    $region47: #{_fixed_patch_prompter_impl.1} parent=1 // pred_check
      _
    $region48: #{_fixed_patch_prompter_impl.1} parent=1 // pred_check_branch
      %55 = sbr.rel (0) target = $region50
    $region49: #{_fixed_patch_prompter_impl.1} parent=1 // pred_region
      _
    $region50: #{_fixed_patch_prompter_impl.1} parent=1 // pred_fallthru
      _
    %v56 = vld [vmem:[#allocation2] sm:$0x7]
    %v57 = vld [vmem:[#allocation2 + $0x4] sm:$0x7]
    %v58 = vld [vmem:[%s1] sm:$0x7]
    %v59 = vadd.f32 %v56, %v58
    %v60 = vadd.f32 %v57, %v58
    %61 = vst [vmem:[#allocation3] sm:$0x7] %v59
    %62 = vst [vmem:[#allocation3 + $0x4] sm:$0x7] %v60
    // Predicated region
    $region51: #{_fixed_patch_prompter_impl.1} parent=1 // pred_check
      _
    $region52: #{_fixed_patch_prompter_impl.1} parent=1 // pred_check_branch
      %64 = sbr.rel (0) target = $region54
    $region53: #{_fixed_patch_prompter_impl.1} parent=1 // pred_region
      // Predicated region
      $region55: #{_fixed_patch_prompter_impl.1} parent=53 // pred_check
        _
      $region56: #{_fixed_patch_prompter_impl.1} parent=53 // pred_check_branch
        %66 = sbr.rel (0) target = $region58
      $region57: #{_fixed_patch_prompter_impl.1} parent=53 // pred_region
        // Predicated region
        $region59: #{_fixed_patch_prompter_impl.1} parent=57 // pred_check
          _
        $region60: #{_fixed_patch_prompter_impl.1} parent=57 // pred_check_branch
          %68 = sbr.rel target = $region62
        $region61: #{_fixed_patch_prompter_impl.1} parent=57 // pred_region
          // Predicated region
          $region74: #{_fixed_patch_prompter_impl.1} parent=61 // pred_check
            _
          $region75: #{_fixed_patch_prompter_impl.1} parent=61 // pred_check_branch
            %85 = sbr.rel (0) target = $region77
          $region76: #{_fixed_patch_prompter_impl.1} parent=61 // pred_region
            loop: start=0, step=1, limit=1
            $region78: #{_fixed_patch_prompter_impl.1} parent=76 // loop_pre_header
              _
            $region79: #{_fixed_patch_prompter_impl.1} parent=76 // loop_header
              %s87 = sphi 0, %s91
              %p88 = scmp.ge.s32.totalorder %s87, 1
              %s92 = sphi [#allocation3], [#allocation3]
              %s93 = sphi %s2, %s2
            $region80: #{_fixed_patch_prompter_impl.1} parent=76 // loop_header_branch
              %90 = sbr.rel (%p88) target = $region84
            $region81: #{_fixed_patch_prompter_impl.1} parent=76 // loop_body
              _
            $region82: #{_fixed_patch_prompter_impl.1} parent=76 // loop_footer
              %s91 = sadd.s32 1, %s87
            $region83: #{_fixed_patch_prompter_impl.1} parent=76 // loop_footer_branch
              %86 = sbr.rel target = $region79
            $region84: #{_fixed_patch_prompter_impl.1} parent=76 // loop_exit
              _
            loop: start=0, step=1, limit=1
            $region85: #{_fixed_patch_prompter_impl.1} parent=76 // loop_pre_header
              _
            $region86: #{_fixed_patch_prompter_impl.1} parent=76 // loop_header
              %s96 = sphi 0, %s100
              %p97 = scmp.ge.s32.totalorder %s96, 1
              %s101 = sphi [#allocation3], [#allocation3]
              %s102 = sphi %s2, %s2
            $region87: #{_fixed_patch_prompter_impl.1} parent=76 // loop_header_branch
              %99 = sbr.rel (%p97) target = $region91
            $region88: #{_fixed_patch_prompter_impl.1} parent=76 // loop_body
              %v103 = vld [vmem:[%s101] sm:$0xf]
              %104 = vst [vmem:[%s102] sm:$0xf] %v103
              %v105 = vld [vmem:[%s101 + $0x4] sm:$0xf]
              %106 = vst [vmem:[%s102 + $0x8] sm:$0xf] %v105
            $region89: #{_fixed_patch_prompter_impl.1} parent=76 // loop_footer
              %s100 = sadd.s32 1, %s96
            $region90: #{_fixed_patch_prompter_impl.1} parent=76 // loop_footer_branch
              %95 = sbr.rel target = $region86
            $region91: #{_fixed_patch_prompter_impl.1} parent=76 // loop_exit
              _
          $region77: #{_fixed_patch_prompter_impl.1} parent=61 // pred_fallthru
            _
        $region62: #{_fixed_patch_prompter_impl.1} parent=57 // pred_fallthru
          _
        // Predicated region
        $region63: #{_fixed_patch_prompter_impl.1} parent=57 // pred_check
          _
        $region64: #{_fixed_patch_prompter_impl.1} parent=57 // pred_check_branch
          %70 = sbr.rel (0) target = $region66
        $region65: #{_fixed_patch_prompter_impl.1} parent=57 // pred_region
          loop: start=0, step=1, limit=1
          $region67: #{_fixed_patch_prompter_impl.1} parent=65 // loop_pre_header
            _
          $region68: #{_fixed_patch_prompter_impl.1} parent=65 // loop_header
            %s73 = sphi 0, %s77
            %p74 = scmp.ge.s32.totalorder %s73, 1
            %s78 = sphi [#allocation3], [#allocation3]
            %s79 = sphi %s2, %s2
          $region69: #{_fixed_patch_prompter_impl.1} parent=65 // loop_header_branch
            %76 = sbr.rel (%p74) target = $region73
          $region70: #{_fixed_patch_prompter_impl.1} parent=65 // loop_body
            %v80 = vld [vmem:[%s78] sm:$0xf]
            %81 = vst [vmem:[%s79] sm:$0xf] %v80
            %v82 = vld [vmem:[%s78 + $0x4] sm:$0xf]
            %83 = vst [vmem:[%s79 + $0x8] sm:$0xf] %v82
          $region71: #{_fixed_patch_prompter_impl.1} parent=65 // loop_footer
            %s77 = sadd.s32 1, %s73
          $region72: #{_fixed_patch_prompter_impl.1} parent=65 // loop_footer_branch
            %72 = sbr.rel target = $region68
          $region73: #{_fixed_patch_prompter_impl.1} parent=65 // loop_exit
            _
        $region66: #{_fixed_patch_prompter_impl.1} parent=57 // pred_fallthru
          _
      $region58: #{_fixed_patch_prompter_impl.1} parent=53 // pred_fallthru
        _
      %107 = vnop
    $region54: #{_fixed_patch_prompter_impl.1} parent=1 // pred_fallthru
      _
    // Predicated region
    $region92: #{_fixed_patch_prompter_impl.1} parent=1 // pred_check
      _
    $region93: #{_fixed_patch_prompter_impl.1} parent=1 // pred_check_branch
      %109 = sbr.rel (0) target = $region95
    $region94: #{_fixed_patch_prompter_impl.1} parent=1 // pred_region
      _
    $region95: #{_fixed_patch_prompter_impl.1} parent=1 // pred_fallthru
      _

</llo_original>
